<compile_context>
chip_gen: v5e
topology: v5e:2x2
jax: 0.10.0
libtpu: 0.0.40
codegen_flags: <defaults>
</compile_context>

<pallas_src>
import jax
import jax.numpy as jnp
from jax.experimental import pallas as pl
from jax.experimental.pallas import tpu as pltpu


# ---------------------------------------------------------------------------
# Fused sincos: one shared range reduction + both polynomials + quadrant select.
# ---------------------------------------------------------------------------
_TWO_OVER_PI = 0.63661977236758134308
# pi/2 split into three f32-exact terms (2x the Cephes pi/4 split).
_DP1 = 1.5703125
_DP2 = 4.837512969970703125e-4
_DP3 = 7.54978995489188216e-8
# Cephes single-precision minimax coefficients on [-pi/4, pi/4].
_S1, _S2, _S3 = -1.6666654611e-1, 8.3321608736e-3, -1.9515295891e-4
_C1, _C2, _C3 = 4.166664568298827e-2, -1.388731625493765e-3, 2.443315711809948e-5


def _sincos(x):
    """Returns (cos(x), sin(x)) for f32 x, sharing a single range reduction."""
    k = jnp.floor(x * _TWO_OVER_PI + 0.5)          # nearest integer multiple of pi/2
    r = x - k * _DP1
    r = r - k * _DP2
    r = r - k * _DP3                                # r in ~[-pi/4, pi/4]
    r2 = r * r
    sin_r = r + r * r2 * (_S1 + r2 * (_S2 + r2 * _S3))
    cos_r = 1.0 - 0.5 * r2 + r2 * r2 * (_C1 + r2 * (_C2 + r2 * _C3))
    q = k.astype(jnp.int32) & 3
    swap = (q & 1) == 1
    sin_sign = jnp.where((q & 2) == 2, -1.0, 1.0)
    cos_sign = jnp.where(((q + 1) & 2) == 2, -1.0, 1.0)
    sin_x = jnp.where(swap, cos_r, sin_r) * sin_sign
    cos_x = jnp.where(swap, sin_r, cos_r) * cos_sign
    return cos_x, sin_x


def _rotary_kernel(pos_ref, inv_ref, cos_ref, sin_ref):
    # pos_ref : (TN, 1)   int32
    # inv_ref : (1, H)    float32   (H = dim // 2, shared across grid steps)
    # cos_ref / sin_ref : (TN, 2*H) in output dtype
    half = inv_ref.shape[-1]

    pos = pos_ref[...].astype(jnp.float32)          # (TN, 1)  int->f32 cast on VPU
    freqs = pos * inv_ref[...]                      # (TN, H)  outer product (VPU)

    cos_h, sin_h = _sincos(freqs)                   # fused: one range reduction
    cos_h = cos_h.astype(cos_ref.dtype)             # (TN, H)
    sin_h = sin_h.astype(sin_ref.dtype)             # (TN, H)

    if half % 128 == 0:
        # Lane-aligned halves (Gemma dim=256 -> H=128): unmasked full-lane stores.
        cos_ref[:, :half] = cos_h
        cos_ref[:, half:] = cos_h
        sin_ref[:, :half] = sin_h
        sin_ref[:, half:] = sin_h
    else:
        # Small / unaligned head dims: single full-width store after a cheap concat.
        cos_ref[...] = jnp.concatenate([cos_h, cos_h], axis=-1)
        sin_ref[...] = jnp.concatenate([sin_h, sin_h], axis=-1)


def gemma_rotary_embedding(x, position_ids, dim, base=10000.0, seq_tile=2048):
    """Returns (cos, sin), each of shape (B, S, dim) in x.dtype."""
    B, S = position_ids.shape
    N = B * S
    half = dim // 2
    out_dtype = x.dtype
    out_bytes = jnp.dtype(out_dtype).itemsize

    # inv_freq buffer (same formula as the PyTorch __init__), f32.
    inv_freq = 1.0 / (base ** (jnp.arange(0, dim, 2, dtype=jnp.float32) / dim))
    inv = inv_freq.reshape(1, half)

    # Keep positions int32 into the kernel; cast to f32 on-chip.
    pos = position_ids.astype(jnp.int32).reshape(N, 1)

    # --- tile selection on the flattened (B*S) axis ---------------------------
    # Cap the tile so the double-buffered cos+sin output blocks stay <= ~16 MiB
    # (comfortable even on v7x's 64 MiB VMEM); otherwise use the full seq_tile
    # to amortize the ~0.35 us fixed per-grid-step overhead.  When tiling, pick
    # a near-divisor of N (multiple of 8) so the last block isn't badly ragged.
    per_row_vmem = 2 * 2 * dim * out_bytes          # cos+sin, double-buffered
    budget = 16 * 1024 * 1024
    max_tn = max(8, (budget // per_row_vmem) // 8 * 8)
    tile_cap = min(seq_tile, max_tn)
    if N <= tile_cap:
        TN = N                                      # full axis: no (8) constraint
    else:
        n_steps = (N + tile_cap - 1) // tile_cap
        TN = (((N + n_steps - 1) // n_steps) + 7) // 8 * 8
    grid = (pl.cdiv(N, TN),)

    # VMEM limit derived from the actual blocks (+ margin for padded pos/inv
    # buffers and compiler scratch), kept well under v7x's 64 MiB.
    vmem_need = per_row_vmem * TN + 2 * TN * 128 * 4 + 8 * max(half, 128) * 4
    vmem_limit = int(min(vmem_need + (8 << 20), 32 << 20))

    cost = pl.CostEstimate(
        flops=N * half * 30,                        # VPU sincos polys + outer product
        transcendentals=0,                          # sin/cos lower to VPU polynomials
        bytes_accessed=N * 4 + half * 4 + 2 * N * dim * out_bytes,
    )

    cos, sin = pl.pallas_call(
        _rotary_kernel,
        grid=grid,
        in_specs=[
            pl.BlockSpec((TN, 1), lambda i: (i, 0)),
            pl.BlockSpec((1, half), lambda i: (0, 0)),
        ],
        out_specs=(
            pl.BlockSpec((TN, dim), lambda i: (i, 0)),
            pl.BlockSpec((TN, dim), lambda i: (i, 0)),
        ),
        out_shape=(
            jax.ShapeDtypeStruct((N, dim), out_dtype),
            jax.ShapeDtypeStruct((N, dim), out_dtype),
        ),
        compiler_params=pltpu.CompilerParams(
            dimension_semantics=("parallel",),
            vmem_limit_bytes=vmem_limit,
        ),
        cost_estimate=cost,
    )(pos, inv)
    return cos.reshape(B, S, dim), sin.reshape(B, S, dim)


def _reference(x, position_ids, dim, base=10000.0):
    # Pure-JAX reference mirroring the PyTorch forward.
    inv_freq = 1.0 / (base ** (jnp.arange(0, dim, 2, dtype=jnp.float32) / dim))
    pos = position_ids.astype(jnp.float32)                      # (B, S)
    freqs = pos[:, :, None] * inv_freq[None, None, :]           # (B, S, dim//2)
    emb = jnp.concatenate([freqs, freqs], axis=-1)              # (B, S, dim)
    return jnp.cos(emb).astype(x.dtype), jnp.sin(emb).astype(x.dtype)


if __name__ == "__main__":
    # Gemma-like head dim (256) at tiny batch/seq; exercises the lane-aligned
    # half-write path (dim//2 == 128).
    B, S, DIM = 2, 8, 256
    key = jax.random.PRNGKey(0)

    x = jax.random.normal(key, (B, S, DIM), dtype=jnp.float32)
    position_ids = jnp.broadcast_to(jnp.arange(S, dtype=jnp.int32), (B, S))

    cos, sin = gemma_rotary_embedding(x, position_ids, DIM)
    jax.block_until_ready((cos, sin))

    cos_ref, sin_ref = _reference(x, position_ids, DIM)
    assert cos.shape == (B, S, DIM) and sin.shape == (B, S, DIM)
    assert cos.dtype == x.dtype and sin.dtype == x.dtype
    assert jnp.allclose(cos, cos_ref, atol=1e-5, rtol=1e-5)
    assert jnp.allclose(sin, sin_ref, atol=1e-5, rtol=1e-5)

    # Unaligned-half (concat) fallback path at a small head dim.
    B2, S2, DIM2 = 2, 16, 32
    x2 = jax.random.normal(jax.random.PRNGKey(1), (B2, S2, DIM2), dtype=jnp.float32)
    pid2 = jnp.broadcast_to(jnp.arange(S2, dtype=jnp.int32), (B2, S2))
    cos2, sin2 = gemma_rotary_embedding(x2, pid2, DIM2)
    jax.block_until_ready((cos2, sin2))
    cos2_ref, sin2_ref = _reference(x2, pid2, DIM2)
    assert jnp.allclose(cos2, cos2_ref, atol=1e-5, rtol=1e-5)
    assert jnp.allclose(sin2, sin2_ref, atol=1e-5, rtol=1e-5)

    # Multi-step grid with a ragged last block (forces tiling via a small tile cap);
    # also checks bf16 output cast.
    B3, S3, DIM3 = 1, 40, 256
    x3 = jax.random.normal(jax.random.PRNGKey(2), (B3, S3, DIM3), dtype=jnp.bfloat16)
    pid3 = jnp.broadcast_to(jnp.arange(S3, dtype=jnp.int32), (B3, S3))
    cos3, sin3 = gemma_rotary_embedding(x3, pid3, DIM3, seq_tile=16)
    jax.block_until_ready((cos3, sin3))
    cos3_ref, sin3_ref = _reference(x3, pid3, DIM3)
    assert cos3.dtype == jnp.bfloat16 and sin3.dtype == jnp.bfloat16
    assert jnp.allclose(cos3.astype(jnp.float32), cos3_ref.astype(jnp.float32),
                        atol=1e-2, rtol=1e-2)
    assert jnp.allclose(sin3.astype(jnp.float32), sin3_ref.astype(jnp.float32),
                        atol=1e-2, rtol=1e-2)

    print("KERNEL_OK")
</pallas_src>

<mosaic_0001>
module attributes {stable_mosaic.version = 11 : i64} {
  func.func @_rotary_kernel(%arg0: i32, %arg1: memref<16x1xi32, #tpu.memory_space<vmem>>, %arg2: memref<1x128xf32, #tpu.memory_space<vmem>>, %arg3: memref<16x256xf32, #tpu.memory_space<vmem>>, %arg4: memref<16x256xf32, #tpu.memory_space<vmem>>) attributes {dimension_semantics = [#tpu.dimension_semantics<parallel>], iteration_bounds = array<i64: 1>, scalar_prefetch = 0 : i64, scratch_operands = 0 : i64, tpu.core_type = #tpu.core_type<tc>, window_params = [{transform_indices = @transform_0, window_bounds = array<i64: 16, 1>}, {pipeline_mode = #tpu.pipeline_mode<synchronous>, transform_indices = @transform_1, window_bounds = array<i64: 1, 128>}, {transform_indices = @transform_2, window_bounds = array<i64: 16, 256>}, {transform_indices = @transform_3, window_bounds = array<i64: 16, 256>}]} {
    %c0 = arith.constant 0 : index
    %c0_0 = arith.constant 0 : index
    %0 = vector.load %arg1[%c0, %c0_0] : memref<16x1xi32, #tpu.memory_space<vmem>>, vector<16x1xi32>
    %1 = arith.sitofp %0 : vector<16x1xi32> to vector<16x1xf32>
    %c0_1 = arith.constant 0 : index
    %c0_2 = arith.constant 0 : index
    %2 = vector.load %arg2[%c0_1, %c0_2] : memref<1x128xf32, #tpu.memory_space<vmem>>, vector<1x128xf32>
    %3 = vector.broadcast %1 : vector<16x1xf32> to vector<16x128xf32>
    %4 = vector.broadcast %2 : vector<1x128xf32> to vector<16x128xf32>
    %5 = arith.mulf %3, %4 : vector<16x128xf32>
    %cst = arith.constant 0.636619746 : f32
    %6 = vector.broadcast %cst : f32 to vector<16x128xf32>
    %7 = arith.mulf %5, %6 : vector<16x128xf32>
    %cst_3 = arith.constant 5.000000e-01 : f32
    %8 = vector.broadcast %cst_3 : f32 to vector<16x128xf32>
    %9 = arith.addf %7, %8 : vector<16x128xf32>
    %10 = math.floor %9 : vector<16x128xf32>
    %cst_4 = arith.constant 1.5703125 : f32
    %11 = vector.broadcast %cst_4 : f32 to vector<16x128xf32>
    %12 = arith.mulf %10, %11 : vector<16x128xf32>
    %13 = arith.subf %5, %12 : vector<16x128xf32>
    %cst_5 = arith.constant 4.83751297E-4 : f32
    %14 = vector.broadcast %cst_5 : f32 to vector<16x128xf32>
    %15 = arith.mulf %10, %14 : vector<16x128xf32>
    %16 = arith.subf %13, %15 : vector<16x128xf32>
    %cst_6 = arith.constant 7.549790e-08 : f32
    %17 = vector.broadcast %cst_6 : f32 to vector<16x128xf32>
    %18 = arith.mulf %10, %17 : vector<16x128xf32>
    %19 = arith.subf %16, %18 : vector<16x128xf32>
    %20 = arith.mulf %19, %19 : vector<16x128xf32>
    %21 = arith.mulf %19, %20 : vector<16x128xf32>
    %cst_7 = arith.constant -1.95152956E-4 : f32
    %22 = vector.broadcast %cst_7 : f32 to vector<16x128xf32>
    %23 = arith.mulf %20, %22 : vector<16x128xf32>
    %cst_8 = arith.constant 0.00833216123 : f32
    %24 = vector.broadcast %cst_8 : f32 to vector<16x128xf32>
    %25 = arith.addf %24, %23 : vector<16x128xf32>
    %26 = arith.mulf %20, %25 : vector<16x128xf32>
    %cst_9 = arith.constant -0.166666552 : f32
    %27 = vector.broadcast %cst_9 : f32 to vector<16x128xf32>
    %28 = arith.addf %27, %26 : vector<16x128xf32>
    %29 = arith.mulf %21, %28 : vector<16x128xf32>
    %30 = arith.addf %19, %29 : vector<16x128xf32>
    %cst_10 = arith.constant 5.000000e-01 : f32
    %31 = vector.broadcast %cst_10 : f32 to vector<16x128xf32>
    %32 = arith.mulf %31, %20 : vector<16x128xf32>
    %cst_11 = arith.constant 1.000000e+00 : f32
    %33 = vector.broadcast %cst_11 : f32 to vector<16x128xf32>
    %34 = arith.subf %33, %32 : vector<16x128xf32>
    %35 = arith.mulf %20, %20 : vector<16x128xf32>
    %cst_12 = arith.constant 2.44331568E-5 : f32
    %36 = vector.broadcast %cst_12 : f32 to vector<16x128xf32>
    %37 = arith.mulf %20, %36 : vector<16x128xf32>
    %cst_13 = arith.constant -0.00138873165 : f32
    %38 = vector.broadcast %cst_13 : f32 to vector<16x128xf32>
    %39 = arith.addf %38, %37 : vector<16x128xf32>
    %40 = arith.mulf %20, %39 : vector<16x128xf32>
    %cst_14 = arith.constant 0.0416666456 : f32
    %41 = vector.broadcast %cst_14 : f32 to vector<16x128xf32>
    %42 = arith.addf %41, %40 : vector<16x128xf32>
    %43 = arith.mulf %35, %42 : vector<16x128xf32>
    %44 = arith.addf %34, %43 : vector<16x128xf32>
    %45 = arith.fptosi %10 : vector<16x128xf32> to vector<16x128xi32>
    %c3_i32 = arith.constant 3 : i32
    %46 = vector.broadcast %c3_i32 : i32 to vector<16x128xi32>
    %47 = arith.andi %45, %46 : vector<16x128xi32>
    %c1_i32 = arith.constant 1 : i32
    %48 = vector.broadcast %c1_i32 : i32 to vector<16x128xi32>
    %49 = arith.andi %47, %48 : vector<16x128xi32>
    %c1_i32_15 = arith.constant 1 : i32
    %50 = vector.broadcast %c1_i32_15 : i32 to vector<16x128xi32>
    %51 = arith.cmpi eq, %49, %50 : vector<16x128xi32>
    %c2_i32 = arith.constant 2 : i32
    %52 = vector.broadcast %c2_i32 : i32 to vector<16x128xi32>
    %53 = arith.andi %47, %52 : vector<16x128xi32>
    %c2_i32_16 = arith.constant 2 : i32
    %54 = vector.broadcast %c2_i32_16 : i32 to vector<16x128xi32>
    %55 = arith.cmpi eq, %53, %54 : vector<16x128xi32>
    %cst_17 = arith.constant -1.000000e+00 : f32
    %cst_18 = arith.constant 1.000000e+00 : f32
    %56 = vector.broadcast %cst_17 : f32 to vector<16x128xf32>
    %57 = vector.broadcast %cst_18 : f32 to vector<16x128xf32>
    %58 = arith.select %55, %56, %57 : vector<16x128xi1>, vector<16x128xf32>
    %c1_i32_19 = arith.constant 1 : i32
    %59 = vector.broadcast %c1_i32_19 : i32 to vector<16x128xi32>
    %60 = arith.addi %47, %59 : vector<16x128xi32>
    %c2_i32_20 = arith.constant 2 : i32
    %61 = vector.broadcast %c2_i32_20 : i32 to vector<16x128xi32>
    %62 = arith.andi %60, %61 : vector<16x128xi32>
    %c2_i32_21 = arith.constant 2 : i32
    %63 = vector.broadcast %c2_i32_21 : i32 to vector<16x128xi32>
    %64 = arith.cmpi eq, %62, %63 : vector<16x128xi32>
    %cst_22 = arith.constant -1.000000e+00 : f32
    %cst_23 = arith.constant 1.000000e+00 : f32
    %65 = vector.broadcast %cst_22 : f32 to vector<16x128xf32>
    %66 = vector.broadcast %cst_23 : f32 to vector<16x128xf32>
    %67 = arith.select %64, %65, %66 : vector<16x128xi1>, vector<16x128xf32>
    %68 = arith.select %51, %44, %30 : vector<16x128xi1>, vector<16x128xf32>
    %69 = arith.mulf %68, %58 : vector<16x128xf32>
    %70 = arith.select %51, %30, %44 : vector<16x128xi1>, vector<16x128xf32>
    %71 = arith.mulf %70, %67 : vector<16x128xf32>
    %c0_24 = arith.constant 0 : index
    %c0_25 = arith.constant 0 : index
    %72 = vector.load %arg3[%c0_24, %c0_25] : memref<16x256xf32, #tpu.memory_space<vmem>>, vector<16x128xf32>
    tpu.vector_store %arg3[%c0_24, %c0_25], %71 {strides = array<i32>} : memref<16x256xf32, #tpu.memory_space<vmem>>, vector<16x128xf32>,
    %c0_26 = arith.constant 0 : index
    %c128 = arith.constant 128 : index
    %73 = vector.load %arg3[%c0_26, %c128] : memref<16x256xf32, #tpu.memory_space<vmem>>, vector<16x128xf32>
    tpu.vector_store %arg3[%c0_26, %c128], %71 {strides = array<i32>} : memref<16x256xf32, #tpu.memory_space<vmem>>, vector<16x128xf32>,
    %c0_27 = arith.constant 0 : index
    %c0_28 = arith.constant 0 : index
    %74 = vector.load %arg4[%c0_27, %c0_28] : memref<16x256xf32, #tpu.memory_space<vmem>>, vector<16x128xf32>
    tpu.vector_store %arg4[%c0_27, %c0_28], %69 {strides = array<i32>} : memref<16x256xf32, #tpu.memory_space<vmem>>, vector<16x128xf32>,
    %c0_29 = arith.constant 0 : index
    %c128_30 = arith.constant 128 : index
    %75 = vector.load %arg4[%c0_29, %c128_30] : memref<16x256xf32, #tpu.memory_space<vmem>>, vector<16x128xf32>
    tpu.vector_store %arg4[%c0_29, %c128_30], %69 {strides = array<i32>} : memref<16x256xf32, #tpu.memory_space<vmem>>, vector<16x128xf32>,
    return
  }
  func.func @transform_0(%arg0: i32) -> (i32, i32) {
    %c0_i32 = arith.constant 0 : i32
    %c0_i32_0 = arith.constant 0 : i32
    return %arg0, %c0_i32 : i32, i32
  }
  func.func @transform_1(%arg0: i32) -> (i32, i32) {
    %c0_i32 = arith.constant 0 : i32
    %c0_i32_0 = arith.constant 0 : i32
    %c0_i32_1 = arith.constant 0 : i32
    return %c0_i32, %c0_i32_0 : i32, i32
  }
  func.func @transform_2(%arg0: i32) -> (i32, i32) {
    %c0_i32 = arith.constant 0 : i32
    %c0_i32_0 = arith.constant 0 : i32
    return %arg0, %c0_i32 : i32, i32
  }
  func.func @transform_3(%arg0: i32) -> (i32, i32) {
    %c0_i32 = arith.constant 0 : i32
    %c0_i32_0 = arith.constant 0 : i32
    return %arg0, %c0_i32 : i32, i32
  }
}

</mosaic_0001>

<llo_original>
// kernel: tpu_custom_call.1
$region0: #{tpu_custom_call.1}
  #allocation0 [shape = 'u32[]', space=smem, size = 0x4, offset = 0x4, fixed_abs, tag = 'smem constant byte address 0x4 - core index']
  #allocation1 [shape = 'u32[72,128]{1,0:T(1,128)}', space=vmem, size = 0x9000, scoped, tag = 'internal scratch']
  %s0 = inlined_call_operand.vmem [shape: s32[16,1], index: 0, kind: input, shape index: {}]
  %s1 = inlined_call_operand.vmem [shape: f32[1,128], index: 1, kind: input, shape index: {}]
  %s2 = inlined_call_operand.hbm [shape: f32[16,256], index: 2, kind: output, shape index: {0}]
  %s3 = inlined_call_operand.hbm [shape: f32[16,256], index: 3, kind: output, shape index: {1}]
  %4 = xla_tuple %s2, %s3
  %s5 = sld [smem:[#allocation0]]
  $region26: #{tpu_custom_call.1} parent=0
    _
  %s7 = ssub.s32 1, %s5
  %s8 = scalar_select 0, %s7, %s5
  $region1: #{tpu_custom_call.1} parent=0
    #allocation2 [shape = 'u8[16384]{0}', space=vmem, size = 0x4000, scoped, tag = 'output window, operand 0, single buffered']
    #allocation3 [shape = 's32[1]{0}', space=sflag, size = 0x4, scoped, tag = 'scoped memory for tpu_custom_call.1']
    #allocation4 [shape = 'u8[16384]{0}', space=vmem, size = 0x4000, scoped, tag = 'output window, operand 1, single buffered']
    #allocation5 [shape = 's32[1]{0}', space=sflag, size = 0x4, scoped, tag = 'scoped memory for tpu_custom_call.1']
    %9 = vsyncpa [#allocation3], 0
    %10 = vsyncpa [#allocation5], 0
    // Predicated region
    $region2: #{tpu_custom_call.1} parent=1 // pred_check
      _
    $region3: #{tpu_custom_call.1} parent=1 // pred_check_branch
      %12 = sbr.rel (0) target = $region5
    $region4: #{tpu_custom_call.1} parent=1 // pred_region
      _
    $region5: #{tpu_custom_call.1} parent=1 // pred_fallthru
      _
    // Predicated region
    $region6: #{tpu_custom_call.1} parent=1 // pred_check
      _
    $region7: #{tpu_custom_call.1} parent=1 // pred_check_branch
      %14 = sbr.rel (0) target = $region9
    $region8: #{tpu_custom_call.1} parent=1 // pred_region
      _
    $region9: #{tpu_custom_call.1} parent=1 // pred_fallthru
      _
    %v15 = vld [vmem:[%s0] sm:$0xff]
    %v16 = vld [vmem:[%s0 + $0x8] sm:$0xff]
    %v17 = vcvt.s32.f32 %v15
    %v18 = vcvt.s32.f32 %v16
    %v19 = vld [vmem:[%s1] sm:$0x1]
    %21 = vset.pattern.permute.xlu0 0
    %22 = vperm.xlu0 %21, %v17
    %v23 = vpop.permute.xlu0 %22
    %26 = vset.pattern.permute.xlu0 0
    %27 = vperm.xlu0 %26, %v18
    %v28 = vpop.permute.xlu0 %27
    %v31 = vperm.slane %v19, 0
    %v33 = vmul.f32 %v23, %v31
    %v34 = vmul.f32 %v28, %v31
    %v35 = vmul.f32 %v33, 0.63661975
    %v36 = vmul.f32 %v34, 0.63661975
    %v37 = vadd.f32 %v35, 0.5
    %v38 = vadd.f32 %v36, 0.5
    %v39 = vfloor.f32 %v37
    %v40 = vfloor.f32 %v38
    %v41 = vmul.f32 %v39, 1.5703125
    %v42 = vmul.f32 %v40, 1.5703125
    %v43 = vsub.f32 %v33, %v41
    %v44 = vsub.f32 %v34, %v42
    %v45 = vmul.f32 %v39, 0.0004837513
    %v46 = vmul.f32 %v40, 0.0004837513
    %v47 = vsub.f32 %v43, %v45
    %v48 = vsub.f32 %v44, %v46
    %v49 = vmul.f32 %v39, 7.54979e-08
    %v50 = vmul.f32 %v40, 7.54979e-08
    %v51 = vsub.f32 %v47, %v49
    %v52 = vsub.f32 %v48, %v50
    %v53 = vmul.f32 %v51, %v51
    %v54 = vmul.f32 %v52, %v52
    %v55 = vmul.f32 %v51, %v53
    %v56 = vmul.f32 %v52, %v54
    %v57 = vmul.f32 %v53, -0.00019515296
    %v58 = vmul.f32 %v54, -0.00019515296
    %v59 = vadd.f32 %v57, 0.008332161
    %v60 = vadd.f32 %v58, 0.008332161
    %v61 = vmul.f32 %v53, %v59
    %v62 = vmul.f32 %v54, %v60
    %v63 = vadd.f32 %v61, -0.16666655
    %v64 = vadd.f32 %v62, -0.16666655
    %v65 = vmul.f32 %v55, %v63
    %v66 = vmul.f32 %v56, %v64
    %v67 = vadd.f32 %v51, %v65
    %v68 = vadd.f32 %v52, %v66
    %v69 = vmul.f32 %v53, 0.5
    %v70 = vmul.f32 %v54, 0.5
    %v71 = vsub.f32 1.0, %v69
    %v72 = vsub.f32 1.0, %v70
    %v73 = vmul.f32 %v53, %v53
    %v74 = vmul.f32 %v54, %v54
    %v75 = vmul.f32 %v53, 2.4433157e-05
    %v76 = vmul.f32 %v54, 2.4433157e-05
    %v77 = vadd.f32 %v75, -0.0013887316
    %v78 = vadd.f32 %v76, -0.0013887316
    %v79 = vmul.f32 %v53, %v77
    %v80 = vmul.f32 %v54, %v78
    %v81 = vadd.f32 %v79, 0.041666646
    %v82 = vadd.f32 %v80, 0.041666646
    %v83 = vmul.f32 %v73, %v81
    %v84 = vmul.f32 %v74, %v82
    %v85 = vadd.f32 %v71, %v83
    %v86 = vadd.f32 %v72, %v84
    %v87 = vcvt.f32.s32.to.zero.pseudo %v39
    %v88 = vcvt.f32.s32.to.zero.pseudo %v40
    %v89 = vand.u32 %v87, 3
    %v90 = vand.u32 %v88, 3
    %v91 = vand.u32 %v89, 1
    %v92 = vand.u32 %v90, 1
    %vm93 = vcmp.eq.s32.totalorder %v91, 1
    %vm94 = vcmp.eq.s32.totalorder %v92, 1
    %v95 = vand.u32 %v89, 2
    %v96 = vand.u32 %v90, 2
    %vm97 = vcmp.eq.s32.totalorder %v95, 2
    %vm98 = vcmp.eq.s32.totalorder %v96, 2
    %v99 = vsel %vm97, -1.0, 1.0
    %v100 = vsel %vm98, -1.0, 1.0
    %v101 = vadd.s32 %v89, 1
    %v102 = vadd.s32 %v90, 1
    %v103 = vand.u32 %v101, 2
    %v104 = vand.u32 %v102, 2
    %vm105 = vcmp.eq.s32.totalorder %v103, 2
    %vm106 = vcmp.eq.s32.totalorder %v104, 2
    %v107 = vsel %vm105, -1.0, 1.0
    %v108 = vsel %vm106, -1.0, 1.0
    %v109 = vsel %vm93, %v85, %v67
    %v110 = vsel %vm94, %v86, %v68
    %v111 = vmul.f32 %v109, %v99
    %v112 = vmul.f32 %v110, %v100
    %v113 = vsel %vm93, %v67, %v85
    %v114 = vsel %vm94, %v68, %v86
    %v115 = vmul.f32 %v113, %v107
    %v116 = vmul.f32 %v114, %v108
    %117 = vst [vmem:[#allocation2] sm:$0xff] %v115
    %118 = vst [vmem:[#allocation2 + $0x10] sm:$0xff] %v116
    %119 = vst [vmem:[#allocation2 + $0x8] sm:$0xff] %v115
    %120 = vst [vmem:[#allocation2 + $0x18] sm:$0xff] %v116
    %121 = vst [vmem:[#allocation4] sm:$0xff] %v111
    %122 = vst [vmem:[#allocation4 + $0x10] sm:$0xff] %v112
    %123 = vst [vmem:[#allocation4 + $0x8] sm:$0xff] %v111
    %124 = vst [vmem:[#allocation4 + $0x18] sm:$0xff] %v112
    // Predicated region
    $region10: #{tpu_custom_call.1} parent=1 // pred_check
      _
    $region11: #{tpu_custom_call.1} parent=1 // pred_check_branch
      %126 = sbr.rel (0) target = $region13
    $region12: #{tpu_custom_call.1} parent=1 // pred_region
      %128 = vsyncadd [#allocation3], 0
      %s129 = sshll.u32 [#allocation2], 4
      %s130 = int_to_ptr.vmem [resolvable:$true] %s129
      %s131 = sshll.u32 %s2, 4
      %s132 = int_to_ptr.hbm [resolvable:$true] %s131
      %137 = dma.vmem_to_hbm [thread:$0]  %s130, 512, %s132, [#allocation3], 256, 256, 16
    $region13: #{tpu_custom_call.1} parent=1 // pred_fallthru
      _
    // Predicated region
    $region14: #{tpu_custom_call.1} parent=1 // pred_check
      _
    $region15: #{tpu_custom_call.1} parent=1 // pred_check_branch
      %139 = sbr.rel (0) target = $region17
    $region16: #{tpu_custom_call.1} parent=1 // pred_region
      %141 = vsyncadd [#allocation5], 0
      %s142 = sshll.u32 [#allocation4], 4
      %s143 = int_to_ptr.vmem [resolvable:$true] %s142
      %s144 = sshll.u32 %s3, 4
      %s145 = int_to_ptr.hbm [resolvable:$true] %s144
      %150 = dma.vmem_to_hbm [thread:$0]  %s143, 512, %s145, [#allocation5], 256, 256, 16
    $region17: #{tpu_custom_call.1} parent=1 // pred_fallthru
      _
    // Predicated region
    $region18: #{tpu_custom_call.1} parent=1 // pred_check
      _
    $region19: #{tpu_custom_call.1} parent=1 // pred_check_branch
      %152 = sbr.rel (0) target = $region21
    $region20: #{tpu_custom_call.1} parent=1 // pred_region
      %154 = dma.done [#allocation3], 512
    $region21: #{tpu_custom_call.1} parent=1 // pred_fallthru
      _
    // Predicated region
    $region22: #{tpu_custom_call.1} parent=1 // pred_check
      _
    $region23: #{tpu_custom_call.1} parent=1 // pred_check_branch
      %156 = sbr.rel (0) target = $region25
    $region24: #{tpu_custom_call.1} parent=1 // pred_region
      %158 = dma.done [#allocation5], 512
    $region25: #{tpu_custom_call.1} parent=1 // pred_fallthru
      _
    %159 = vsyncpa [#allocation3], 1
    %160 = vsyncpa [#allocation5], 1

</llo_original>
